<compile_context>
chip_gen: v7x
topology: tpu7x:2x2x1
jax: 0.10.0
libtpu: 0.0.40
codegen_flags: <defaults>
</compile_context>

<pallas_src>
import functools

import jax
import jax.numpy as jnp
from jax.experimental import pallas as pl
from jax.experimental.pallas import tpu as pltpu

_LANES = 128
_W_ACC = 8 * _LANES                  # accumulator width: 8 lane-chunks = 1024
_TARGET_STEP_BYTES = 3 * 2**20       # ~3 MiB of streamed HBM payload per step
_STREAM_VMEM_BUDGET = 24 * 2**20     # double-buffered stream buffers in VMEM


def _num_partitions():
    """2 on dual-TensorCore chips (v7x / v4 megacore), else 1 (v5e / v6e)."""
    try:
        kind = jax.devices()[0].device_kind.lower()
    except Exception:
        return 1
    return 2 if ("v7" in kind or "v4" in kind) else 1


def _vmem_capacity_bytes():
    try:
        cap = getattr(pltpu.get_tpu_info(), "vmem_capacity_bytes", None)
        if cap:
            return int(cap)
    except Exception:
        pass
    return 64 * 2**20                # conservative: v7x per-TensorCore VMEM


_P = _num_partitions()
_VMEM_CAP = _vmem_capacity_bytes()


def _mv_kernel(f_ref, w_ref, o_ref, *, bs, tile, n_inner, bpp, n_blocks,
               grid_blocks, total_cols):
    """One reduction step of out = features @ Dw as a pure-VPU MAC.

    f_ref : (bs, tile)     feature block (columns [blk*tile, (blk+1)*tile))
    w_ref : (1,  tile)     matching Dw block (streamed in lockstep)
    o_ref : (bs, _W_ACC)   per-partition lane-wise partial sums (f32, resident)
    """
    p = pl.program_id(0)             # partition (parallel axis; 2 TCs on v7x)
    k = pl.program_id(1)             # reduction step within the partition
    blk = p * bpp + k                # global block index along the F axis

    @pl.when(k == 0)
    def _init():
        o_ref[...] = jnp.zeros_like(o_ref)

    def mac(masked):
        lane = (jax.lax.broadcasted_iota(jnp.int32, (1, _W_ACC), 1)
                if masked else None)

        def body(i, acc):
            start = pl.multiple_of(i * _W_ACC, _W_ACC)
            f = f_ref[:, pl.ds(start, _W_ACC)]           # (bs, 1024)
            w = w_ref[:, pl.ds(start, _W_ACC)]           # (1, 1024) -> broadcast
            prod = f * w
            if masked:
                # Mask the *product*: the OOB lanes of both f and w hold
                # unspecified data (possibly NaN/Inf), so masking only one
                # operand would not be safe.
                col = blk * tile + start + lane
                prod = jnp.where(col < total_cols, prod, 0.0)
            return acc + prod

        acc = jax.lax.fori_loop(0, n_inner, body,
                                jnp.zeros((bs, _W_ACC), jnp.float32),
                                unroll=min(8, n_inner))
        o_ref[...] += acc

    ragged = (total_cols % tile) != 0            # static (trace-time) flag
    if ragged:
        @pl.when(blk < n_blocks - 1)             # full interior blocks
        def _full():
            mac(False)

        @pl.when(blk == n_blocks - 1)            # ragged last block (masked)
        def _tail():
            mac(True)
        # blk >= n_blocks (phantom blocks of the last partition): skipped.
    elif grid_blocks > n_blocks:
        @pl.when(blk < n_blocks)                 # skip phantom blocks only
        def _full():
            mac(False)
    else:
        mac(False)


@jax.jit
def discriminator_forward(features, dw):
    """Pallas DiscriminatorModelC.forward(features, is_feature=True).

    features: (bs, F) float32
    dw      : (F,)    float32   (Dw parameter; fold factr into it for the
                                 is_feature=False path)
    returns : (bs,)   float32   == torch.mv(features, Dw)
    """
    bs, F = features.shape
    assert dw.shape == (F,)

    if F < _W_ACC:
        # Degenerate tiny feature dimension: not worth a kernel launch.
        return (features @ dw).astype(features.dtype)

    P = _P
    bs_pad = ((bs + 7) // 8) * 8     # sublane-padded rows in VMEM

    # Block width along F: multiple of _W_ACC, sized for ~_TARGET_STEP_BYTES
    # of HBM payload per step, bounded by the double-buffered VMEM budget,
    # by F itself (so no block origin is out of range; the ragged tail is
    # masked in-kernel) and by one partition's share of the columns.
    tile_target = _TARGET_STEP_BYTES // ((bs + 1) * 4)
    tile_vmem = _STREAM_VMEM_BUDGET // ((bs_pad + 8) * 4 * 2)
    cap_f = (F // _W_ACC) * _W_ACC
    share = pl.cdiv(pl.cdiv(F, P), _W_ACC) * _W_ACC
    tile = min(tile_target, tile_vmem, cap_f, share)
    tile = max(_W_ACC, (tile // _W_ACC) * _W_ACC)

    n_blocks = pl.cdiv(F, tile)      # real blocks along F
    bpp = pl.cdiv(n_blocks, P)       # blocks per partition
    grid_blocks = P * bpp            # includes <= P-1 phantom blocks
    n_inner = tile // _W_ACC

    w2d = dw.reshape(1, F)           # free (bitcast) reshape

    # VMEM: double-buffered feature + Dw streams (sublane-padded) + headroom.
    stream_bytes = 2 * (bs_pad + 8) * tile * 4
    vmem_limit = int(min(_VMEM_CAP * 3 // 4,
                         max(32 * 2**20, stream_bytes + (4 << 20))))

    def blk_index(p, k):
        # Clamp the phantom blocks of the last partition onto the last real
        # block (their compute is skipped in-kernel).
        return (0, jnp.minimum(p * bpp + k, n_blocks - 1))

    kernel = functools.partial(
        _mv_kernel, bs=bs, tile=tile, n_inner=n_inner, bpp=bpp,
        n_blocks=n_blocks, grid_blocks=grid_blocks, total_cols=F)

    partials = pl.pallas_call(
        kernel,
        out_shape=jax.ShapeDtypeStruct((P, bs, _W_ACC), jnp.float32),
        grid=(P, bpp),
        in_specs=[
            pl.BlockSpec((bs, tile), blk_index),     # feature stream
            pl.BlockSpec((1, tile), blk_index),      # Dw stream (lockstep)
        ],
        out_specs=pl.BlockSpec((None, bs, _W_ACC), lambda p, k: (p, 0, 0)),
        compiler_params=pltpu.CompilerParams(
            dimension_semantics=("parallel", "arbitrary"),
            vmem_limit_bytes=vmem_limit,
        ),
    )(features, w2d)

    # Tiny final reduction of the per-partition lane-wise partials (XLA glue).
    return partials.sum(axis=(0, 2)).astype(features.dtype)


if __name__ == "__main__":
    # Deterministic synthetic setup (small shapes).
    bs = 2
    features_dim = 2500   # stands in for total_nbcov; deliberately not 1024-aligned
    factr = 10.0          # self.factr_ops[i] -- uniform scaling, folded into Dw

    key = jax.random.PRNGKey(0)
    k_feat, k_w = jax.random.split(key)

    # Precomputed "wph features" (what the wph ops would have produced before
    # the factr scaling).  The factr scaling is folded into Dw instead of being
    # applied to the big feature tensor (same result, no extra HBM round trip).
    raw_features = jax.random.normal(k_feat, (bs, features_dim), dtype=jnp.float32)

    # Dw init: torch.randn(Features) / sqrt(Features)
    dw = jax.random.normal(k_w, (features_dim,), dtype=jnp.float32) / jnp.sqrt(
        jnp.float32(features_dim)
    )

    out = discriminator_forward(raw_features, dw * factr)
    out = jax.block_until_ready(out)

    # Reference: compute_features scaling (factr) followed by torch.mv.
    ref = (raw_features * factr) @ dw
    assert out.shape == (bs,)
    assert jnp.allclose(out, ref, atol=1e-3, rtol=1e-3), (out, ref)

    print("KERNEL_OK")
</pallas_src>

<mosaic_0001>
module attributes {stable_mosaic.version = 11 : i64} {
  func.func @_mv_kernel(%arg0: i32, %arg1: i32, %arg2: memref<2x2048xf32, #tpu.memory_space<vmem>>, %arg3: memref<1x2048xf32, #tpu.memory_space<vmem>>, %arg4: memref<1x2x1024xf32, #tpu.memory_space<vmem>>) attributes {dimension_semantics = [#tpu.dimension_semantics<parallel>, #tpu.dimension_semantics<arbitrary>], iteration_bounds = array<i64: 1, 2>, scalar_prefetch = 0 : i64, scratch_operands = 0 : i64, tpu.core_type = #tpu.core_type<tc>, window_params = [{transform_indices = @transform_0, window_bounds = array<i64: 2, 2048>}, {transform_indices = @transform_1, window_bounds = array<i64: 1, 2048>}, {transform_indices = @transform_2, window_bounds = array<i64: 1, 2, 1024>}]} {
    %c2_i32 = arith.constant 2 : i32
    %0 = arith.muli %arg0, %c2_i32 : i32
    %1 = arith.addi %0, %arg1 : i32
    %c0_i32 = arith.constant 0 : i32
    %2 = arith.cmpi eq, %arg1, %c0_i32 : i32
    %3 = arith.extui %2 : i1 to i32
    %c0_i32_0 = arith.constant 0 : i32
    %4 = arith.cmpi ne, %3, %c0_i32_0 : i32
    scf.if %4 {
      %cst = arith.constant 0.000000e+00 : f32
      %11 = vector.broadcast %cst : f32 to vector<2x1024xf32>
      %c0 = arith.constant 0 : index
      %c0_4 = arith.constant 0 : index
      %c0_5 = arith.constant 0 : index
      %12 = vector.load %arg4[%c0, %c0_4, %c0_5] : memref<1x2x1024xf32, #tpu.memory_space<vmem>>, vector<1x2x1024xf32>
      %13 = vector.shape_cast %12 : vector<1x2x1024xf32> to vector<2x1024xf32>
      %14 = vector.shape_cast %11 : vector<2x1024xf32> to vector<1x2x1024xf32>
      tpu.vector_store %arg4[%c0, %c0_4, %c0_5], %14 {strides = array<i32>} : memref<1x2x1024xf32, #tpu.memory_space<vmem>>, vector<1x2x1024xf32>,
    } else {
    }
    %c1_i32 = arith.constant 1 : i32
    %5 = arith.cmpi slt, %1, %c1_i32 : i32
    %6 = arith.extui %5 : i1 to i32
    %c0_i32_1 = arith.constant 0 : i32
    %7 = arith.cmpi ne, %6, %c0_i32_1 : i32
    scf.if %7 {
      %cst = arith.constant 0.000000e+00 : f32
      %11 = vector.broadcast %cst : f32 to vector<2x1024xf32>
      %c0_i32_4 = arith.constant 0 : i32
      %c1024_i32 = arith.constant 1024 : i32
      %12 = arith.muli %c0_i32_4, %c1024_i32 : i32
      %13 = tpu.assume_multiple %12, 1024 : i32
      %c0 = arith.constant 0 : index
      %14 = arith.index_cast %13 : i32 to index
      %15 = vector.load %arg2[%c0, %14] : memref<2x2048xf32, #tpu.memory_space<vmem>>, vector<2x1024xf32>
      %c0_5 = arith.constant 0 : index
      %16 = arith.index_cast %13 : i32 to index
      %17 = vector.load %arg3[%c0_5, %16] : memref<1x2048xf32, #tpu.memory_space<vmem>>, vector<1x1024xf32>
      %18 = vector.broadcast %17 : vector<1x1024xf32> to vector<2x1024xf32>
      %19 = arith.mulf %15, %18 : vector<2x1024xf32>
      %20 = arith.addf %11, %19 : vector<2x1024xf32>
      %c1_i32_6 = arith.constant 1 : i32
      %c1024_i32_7 = arith.constant 1024 : i32
      %21 = arith.muli %c1_i32_6, %c1024_i32_7 : i32
      %22 = tpu.assume_multiple %21, 1024 : i32
      %c0_8 = arith.constant 0 : index
      %23 = arith.index_cast %22 : i32 to index
      %24 = vector.load %arg2[%c0_8, %23] : memref<2x2048xf32, #tpu.memory_space<vmem>>, vector<2x1024xf32>
      %c0_9 = arith.constant 0 : index
      %25 = arith.index_cast %22 : i32 to index
      %26 = vector.load %arg3[%c0_9, %25] : memref<1x2048xf32, #tpu.memory_space<vmem>>, vector<1x1024xf32>
      %27 = vector.broadcast %26 : vector<1x1024xf32> to vector<2x1024xf32>
      %28 = arith.mulf %24, %27 : vector<2x1024xf32>
      %29 = arith.addf %20, %28 : vector<2x1024xf32>
      %c2_i32_10 = arith.constant 2 : i32
      %c0_11 = arith.constant 0 : index
      %c0_12 = arith.constant 0 : index
      %c0_13 = arith.constant 0 : index
      %30 = vector.load %arg4[%c0_11, %c0_12, %c0_13] : memref<1x2x1024xf32, #tpu.memory_space<vmem>>, vector<1x2x1024xf32>
      %31 = vector.shape_cast %30 : vector<1x2x1024xf32> to vector<2x1024xf32>
      %32 = arith.addf %31, %29 : vector<2x1024xf32>
      %c0_14 = arith.constant 0 : index
      %c0_15 = arith.constant 0 : index
      %c0_16 = arith.constant 0 : index
      %33 = vector.load %arg4[%c0_14, %c0_15, %c0_16] : memref<1x2x1024xf32, #tpu.memory_space<vmem>>, vector<1x2x1024xf32>
      %34 = vector.shape_cast %33 : vector<1x2x1024xf32> to vector<2x1024xf32>
      %35 = vector.shape_cast %32 : vector<2x1024xf32> to vector<1x2x1024xf32>
      tpu.vector_store %arg4[%c0_14, %c0_15, %c0_16], %35 {strides = array<i32>} : memref<1x2x1024xf32, #tpu.memory_space<vmem>>, vector<1x2x1024xf32>,
    } else {
    }
    %c1_i32_2 = arith.constant 1 : i32
    %8 = arith.cmpi eq, %1, %c1_i32_2 : i32
    %9 = arith.extui %8 : i1 to i32
    %c0_i32_3 = arith.constant 0 : i32
    %10 = arith.cmpi ne, %9, %c0_i32_3 : i32
    scf.if %10 {
      %11 = tpu.iota {dimensions = array<i32: 1>} : vector<1x1024xi32>
      %cst = arith.constant 0.000000e+00 : f32
      %12 = vector.broadcast %cst : f32 to vector<2x1024xf32>
      %c0_i32_4 = arith.constant 0 : i32
      %c1024_i32 = arith.constant 1024 : i32
      %13 = arith.muli %c0_i32_4, %c1024_i32 : i32
      %14 = tpu.assume_multiple %13, 1024 : i32
      %c0 = arith.constant 0 : index
      %15 = arith.index_cast %14 : i32 to index
      %16 = vector.load %arg2[%c0, %15] : memref<2x2048xf32, #tpu.memory_space<vmem>>, vector<2x1024xf32>
      %c0_5 = arith.constant 0 : index
      %17 = arith.index_cast %14 : i32 to index
      %18 = vector.load %arg3[%c0_5, %17] : memref<1x2048xf32, #tpu.memory_space<vmem>>, vector<1x1024xf32>
      %19 = vector.broadcast %18 : vector<1x1024xf32> to vector<2x1024xf32>
      %20 = arith.mulf %16, %19 : vector<2x1024xf32>
      %c2048_i32 = arith.constant 2048 : i32
      %21 = arith.muli %1, %c2048_i32 : i32
      %22 = arith.addi %21, %14 : i32
      %23 = vector.broadcast %22 : i32 to vector<1x1024xi32>
      %24 = arith.addi %23, %11 : vector<1x1024xi32>
      %c2500_i32 = arith.constant 2500 : i32
      %25 = vector.broadcast %c2500_i32 : i32 to vector<1x1024xi32>
      %26 = arith.cmpi slt, %24, %25 : vector<1x1024xi32>
      %cst_6 = arith.constant 0.000000e+00 : f32
      %27 = vector.shape_cast %26 : vector<1x1024xi1> to vector<1x1024xi1>
      %28 = vector.broadcast %27 : vector<1x1024xi1> to vector<2x1024xi1>
      %29 = vector.broadcast %cst_6 : f32 to vector<2x1024xf32>
      %30 = arith.select %28, %20, %29 : vector<2x1024xi1>, vector<2x1024xf32>
      %31 = arith.addf %12, %30 : vector<2x1024xf32>
      %c1_i32_7 = arith.constant 1 : i32
      %c1024_i32_8 = arith.constant 1024 : i32
      %32 = arith.muli %c1_i32_7, %c1024_i32_8 : i32
      %33 = tpu.assume_multiple %32, 1024 : i32
      %c0_9 = arith.constant 0 : index
      %34 = arith.index_cast %33 : i32 to index
      %35 = vector.load %arg2[%c0_9, %34] : memref<2x2048xf32, #tpu.memory_space<vmem>>, vector<2x1024xf32>
      %c0_10 = arith.constant 0 : index
      %36 = arith.index_cast %33 : i32 to index
      %37 = vector.load %arg3[%c0_10, %36] : memref<1x2048xf32, #tpu.memory_space<vmem>>, vector<1x1024xf32>
      %38 = vector.broadcast %37 : vector<1x1024xf32> to vector<2x1024xf32>
      %39 = arith.mulf %35, %38 : vector<2x1024xf32>
      %c2048_i32_11 = arith.constant 2048 : i32
      %40 = arith.muli %1, %c2048_i32_11 : i32
      %41 = arith.addi %40, %33 : i32
      %42 = vector.broadcast %41 : i32 to vector<1x1024xi32>
      %43 = arith.addi %42, %11 : vector<1x1024xi32>
      %c2500_i32_12 = arith.constant 2500 : i32
      %44 = vector.broadcast %c2500_i32_12 : i32 to vector<1x1024xi32>
      %45 = arith.cmpi slt, %43, %44 : vector<1x1024xi32>
      %cst_13 = arith.constant 0.000000e+00 : f32
      %46 = vector.shape_cast %45 : vector<1x1024xi1> to vector<1x1024xi1>
      %47 = vector.broadcast %46 : vector<1x1024xi1> to vector<2x1024xi1>
      %48 = vector.broadcast %cst_13 : f32 to vector<2x1024xf32>
      %49 = arith.select %47, %39, %48 : vector<2x1024xi1>, vector<2x1024xf32>
      %50 = arith.addf %31, %49 : vector<2x1024xf32>
      %c2_i32_14 = arith.constant 2 : i32
      %c0_15 = arith.constant 0 : index
      %c0_16 = arith.constant 0 : index
      %c0_17 = arith.constant 0 : index
      %51 = vector.load %arg4[%c0_15, %c0_16, %c0_17] : memref<1x2x1024xf32, #tpu.memory_space<vmem>>, vector<1x2x1024xf32>
      %52 = vector.shape_cast %51 : vector<1x2x1024xf32> to vector<2x1024xf32>
      %53 = arith.addf %52, %50 : vector<2x1024xf32>
      %c0_18 = arith.constant 0 : index
      %c0_19 = arith.constant 0 : index
      %c0_20 = arith.constant 0 : index
      %54 = vector.load %arg4[%c0_18, %c0_19, %c0_20] : memref<1x2x1024xf32, #tpu.memory_space<vmem>>, vector<1x2x1024xf32>
      %55 = vector.shape_cast %54 : vector<1x2x1024xf32> to vector<2x1024xf32>
      %56 = vector.shape_cast %53 : vector<2x1024xf32> to vector<1x2x1024xf32>
      tpu.vector_store %arg4[%c0_18, %c0_19, %c0_20], %56 {strides = array<i32>} : memref<1x2x1024xf32, #tpu.memory_space<vmem>>, vector<1x2x1024xf32>,
    } else {
    }
    return
  }
  func.func @transform_0(%arg0: i32, %arg1: i32) -> (i32, i32) {
    %c2_i32 = arith.constant 2 : i32
    %0 = arith.muli %arg0, %c2_i32 : i32
    %1 = arith.addi %0, %arg1 : i32
    %c1_i32 = arith.constant 1 : i32
    %2 = arith.minsi %1, %c1_i32 : i32
    %c0_i32 = arith.constant 0 : i32
    %c0_i32_0 = arith.constant 0 : i32
    return %c0_i32, %2 : i32, i32
  }
  func.func @transform_1(%arg0: i32, %arg1: i32) -> (i32, i32) {
    %c2_i32 = arith.constant 2 : i32
    %0 = arith.muli %arg0, %c2_i32 : i32
    %1 = arith.addi %0, %arg1 : i32
    %c1_i32 = arith.constant 1 : i32
    %2 = arith.minsi %1, %c1_i32 : i32
    %c0_i32 = arith.constant 0 : i32
    %c0_i32_0 = arith.constant 0 : i32
    return %c0_i32, %2 : i32, i32
  }
  func.func @transform_2(%arg0: i32, %arg1: i32) -> (i32, i32, i32) {
    %c0_i32 = arith.constant 0 : i32
    %c0_i32_0 = arith.constant 0 : i32
    %c0_i32_1 = arith.constant 0 : i32
    return %arg0, %c0_i32, %c0_i32_0 : i32, i32, i32
  }
}

</mosaic_0001>

<llo_original>
// kernel: discriminator_forward.1
$region0: #{discriminator_forward.1}
  #allocation0 [shape = 'u32[]', space=smem, size = 0x4, offset = 0x4, fixed_abs, tag = 'smem constant byte address 0x4 - core index']
  #allocation1 [shape = 'u32[144,128]{1,0:T(1,128)}', space=vmem, size = 0x12000, scoped, tag = 'internal scratch']
  %s0 = inlined_call_operand.vmem [shape: f32[2,2500], index: 0, kind: input, shape index: {}]
  %s1 = inlined_call_operand.vmem [shape: f32[1,2500], index: 1, kind: input, shape index: {}]
  %s2 = inlined_call_operand.vmem [shape: f32[1,2,1024], index: 2, kind: output, shape index: {}]
  %s3 = sld [smem:[#allocation0]]
  $region53: #{discriminator_forward.1} parent=0
    _
  %s5 = ssub.s32 1, %s3
  %s6 = scalar_select 0, %s5, %s3
  loop: start=0, step=1, limit=4
  $region2: #{discriminator_forward.1} parent=0 // loop_pre_header
    _
  $region3: #{discriminator_forward.1} parent=0 // loop_header
    %s8 = sphi 0, %s12
    %p9 = scmp.ge.s32.totalorder %s8, 4
    %s15 = sphi 0, %s27
    %s16 = sphi 0, %s23
    %s17 = sphi 0, %s15
    %s18 = sphi 0, %s16
    %s19 = sphi 0, %s17
    %s20 = sphi 0, %s18
    %s38 = sphi 0, %s40
    %s41 = sphi 0, %s38
    %s42 = sphi 0, %s41
    %s58 = sphi 0, %s42
    %s72 = sphi 0, %s74
    %s75 = sphi 0, %s72
    %s76 = sphi 0, %s75
    %s92 = sphi 0, %s76
    %s98 = sphi 0, %s100
    %s101 = sphi 0, %s98
    %s102 = sphi 0, %s101
    %s118 = sphi 0, %s102
  $region4: #{discriminator_forward.1} parent=0 // loop_header_branch
    %11 = sbr.rel (%p9) target = $region8
  $region5: #{discriminator_forward.1} parent=0 // loop_body
    %s13 = ssub.s32 %s8, 1
    %s14 = ssub.s32 %s8, 2
    %s21 = sadd.s32 1, %s16
    %p22 = scmp.ge.s32.totalorder %s21, 2
    %s23 = scalar_select %p22, 0, %s21
    %s24 = sadd.s32 1, %s15
    %s25 = scalar_select %p22, %s24, %s15
    %p26 = scmp.ge.s32.totalorder %s25, 1
    %s27 = scalar_select %p26, 0, %s25
    %s28 = smul.u32 %s15, 2
    %s29 = sadd.s32 %s28, %s16
    %p30 = scmp.lt.s32.totalorder %s29, 1
    %s31 = scalar_select %p30, %s29, 1
    %s32 = smul.u32 %s27, 2
    %s33 = sadd.s32 %s32, %s23
    %p34 = scmp.lt.s32.totalorder %s33, 1
    %s35 = scalar_select %p34, %s33, 1
    %s36 = ssub.s32 %s31, %s35
    %p37 = scmp.eq.s32.totalorder %s36, 0
    %s39 = sadd.s32 %s38, 1
    %s40 = scalar_select %p37, %s38, %s39
    %p43 = pneg %p37
    %p44 = scmp.eq.s32.totalorder %s8, 1
    %p45 = por %p43, %p44
    %p46 = scmp.ne.s32.totalorder %s38, %s41
    %p47 = scmp.eq.s32.totalorder %s8, 0
    %p48 = por %p46, %p47
    %p49 = scmp.ne.s32.totalorder %s38, %s41
    %p50 = scmp.eq.s32.totalorder %s13, 1
    %p51 = por %p49, %p50
    %p52 = scmp.ne.s32.totalorder %s41, %s42
    %p53 = scmp.eq.s32.totalorder %s13, 0
    %p54 = por %p52, %p53
    %p55 = scmp.ne.s32.totalorder %s41, %s42
    %p56 = scmp.eq.s32.totalorder %s14, 1
    %p57 = por %p55, %p56
    %p59 = scmp.ne.s32.totalorder %s42, %s58
    %p60 = scmp.eq.s32.totalorder %s14, 0
    %p61 = por %p59, %p60
    %s62 = smul.u32 %s15, 2
    %s63 = sadd.s32 %s62, %s16
    %p64 = scmp.lt.s32.totalorder %s63, 1
    %s65 = scalar_select %p64, %s63, 1
    %s66 = smul.u32 %s27, 2
    %s67 = sadd.s32 %s66, %s23
    %p68 = scmp.lt.s32.totalorder %s67, 1
    %s69 = scalar_select %p68, %s67, 1
    %s70 = ssub.s32 %s65, %s69
    %p71 = scmp.eq.s32.totalorder %s70, 0
    %s73 = sadd.s32 %s72, 1
    %s74 = scalar_select %p71, %s72, %s73
    %p77 = pneg %p71
    %p78 = scmp.eq.s32.totalorder %s8, 1
    %p79 = por %p77, %p78
    %p80 = scmp.ne.s32.totalorder %s72, %s75
    %p81 = scmp.eq.s32.totalorder %s8, 0
    %p82 = por %p80, %p81
    %p83 = scmp.ne.s32.totalorder %s72, %s75
    %p84 = scmp.eq.s32.totalorder %s13, 1
    %p85 = por %p83, %p84
    %p86 = scmp.ne.s32.totalorder %s75, %s76
    %p87 = scmp.eq.s32.totalorder %s13, 0
    %p88 = por %p86, %p87
    %p89 = scmp.ne.s32.totalorder %s75, %s76
    %p90 = scmp.eq.s32.totalorder %s14, 1
    %p91 = por %p89, %p90
    %p93 = scmp.ne.s32.totalorder %s76, %s92
    %p94 = scmp.eq.s32.totalorder %s14, 0
    %p95 = por %p93, %p94
    %s96 = ssub.s32 %s15, %s27
    %p97 = scmp.eq.s32.totalorder %s96, 0
    %s99 = sadd.s32 %s98, 1
    %s100 = scalar_select %p97, %s98, %s99
    %p103 = pneg %p97
    %p104 = scmp.eq.s32.totalorder %s8, 1
    %p105 = por %p103, %p104
    %p106 = scmp.ne.s32.totalorder %s98, %s101
    %p107 = scmp.eq.s32.totalorder %s8, 0
    %p108 = por %p106, %p107
    %p109 = scmp.ne.s32.totalorder %s98, %s101
    %p110 = scmp.eq.s32.totalorder %s13, 1
    %p111 = por %p109, %p110
    %p112 = scmp.ne.s32.totalorder %s101, %s102
    %p113 = scmp.eq.s32.totalorder %s13, 0
    %p114 = por %p112, %p113
    %p115 = scmp.ne.s32.totalorder %s101, %s102
    %p116 = scmp.eq.s32.totalorder %s14, 1
    %p117 = por %p115, %p116
    %p119 = scmp.ne.s32.totalorder %s102, %s118
    %p120 = scmp.eq.s32.totalorder %s14, 0
    %p121 = por %p119, %p120
    %p122 = scmp.le.s32.totalorder 1, %s8
    %p123 = scmp.lt.s32.totalorder %s8, 3
    %p124 = pnand %p122, %p123
    %p125 = pneg %p124
    // Predicated region
    $region9: #{discriminator_forward.1} parent=5 // pred_check
      _
    $region10: #{discriminator_forward.1} parent=5 // pred_check_branch
      %127 = sbr.rel (%p124) target = $region12
    $region11: #{discriminator_forward.1} parent=5 // pred_region
      %s128 = ssub.s32 %s8, 1
    $region12: #{discriminator_forward.1} parent=5 // pred_fallthru
      _
    %p129 = scmp.lt.s32.totalorder %s8, 2
    // Predicated region
    $region13: #{discriminator_forward.1} parent=5 // pred_check
      %p130 = pneg %p129
    $region14: #{discriminator_forward.1} parent=5 // pred_check_branch
      %132 = sbr.rel (%p130) target = $region16
    $region15: #{discriminator_forward.1} parent=5 // pred_region
      // Predicated region
      $region17: #{discriminator_forward.1} parent=15 // pred_check
        %p133 = pneg %p48
      $region18: #{discriminator_forward.1} parent=15 // pred_check_branch
        %135 = sbr.rel (%p133) target = $region20
      $region19: #{discriminator_forward.1} parent=15 // pred_region
        %s136 = smul.u32 %s15, 2
        %s137 = sadd.s32 %s136, %s16
        %p138 = scmp.lt.s32.totalorder %s137, 1
        %s139 = scalar_select %p138, %s137, 1
        %s140 = smul.u32 16, %s139
        %s141 = ssub.s32 20, %s140
        %p142 = scmp.lt.s32.totalorder %s141, 16
        %s143 = scalar_select %p142, %s141, 16
        %s144 = smul.u32 32, %s143
        %p145 = scmp.lt.s32.totalorder %s140, 19
        %s146 = scalar_select %p145, %s140, 19
        %s147 = smul.addr %s146, 2
        %s148 = scalar_lea.vmem %s0, %s147
        %s149 = smul.u32 %s15, 2
        %s150 = sadd.s32 %s149, %s16
        %p151 = scmp.lt.s32.totalorder %s150, 1
        %s152 = scalar_select %p151, %s150, 1
        %s153 = smul.u32 16, %s152
        %s154 = ssub.s32 20, %s153
        %p155 = scmp.lt.s32.totalorder %s154, 16
        %s156 = scalar_select %p155, %s154, 16
        %s157 = smul.u32 32, %s156
      $region20: #{discriminator_forward.1} parent=15 // pred_fallthru
        _
      // Predicated region
      $region21: #{discriminator_forward.1} parent=15 // pred_check
        %p158 = pneg %p82
      $region22: #{discriminator_forward.1} parent=15 // pred_check_branch
        %160 = sbr.rel (%p158) target = $region24
      $region23: #{discriminator_forward.1} parent=15 // pred_region
        %s161 = smul.u32 %s15, 2
        %s162 = sadd.s32 %s161, %s16
        %p163 = scmp.lt.s32.totalorder %s162, 1
        %s164 = scalar_select %p163, %s162, 1
        %s165 = smul.u32 16, %s164
        %s166 = ssub.s32 20, %s165
        %p167 = scmp.lt.s32.totalorder %s166, 16
        %s168 = scalar_select %p167, %s166, 16
        %s169 = smul.u32 16, %s168
        %p170 = scmp.lt.s32.totalorder %s165, 19
        %s171 = scalar_select %p170, %s165, 19
        %s172 = scalar_lea.vmem %s1, %s171
        %s173 = smul.u32 %s15, 2
        %s174 = sadd.s32 %s173, %s16
        %p175 = scmp.lt.s32.totalorder %s174, 1
        %s176 = scalar_select %p175, %s174, 1
        %s177 = smul.u32 16, %s176
        %s178 = ssub.s32 20, %s177
        %p179 = scmp.lt.s32.totalorder %s178, 16
        %s180 = scalar_select %p179, %s178, 16
        %s181 = smul.u32 16, %s180
      $region24: #{discriminator_forward.1} parent=15 // pred_fallthru
        _
    $region16: #{discriminator_forward.1} parent=5 // pred_fallthru
      _
    %p182 = scmp.le.s32.totalorder 1, %s8
    %p183 = scmp.lt.s32.totalorder %s8, 3
    %p184 = pnand %p182, %p183
    %p185 = pneg %p184
    // Predicated region
    $region25: #{discriminator_forward.1} parent=5 // pred_check
      _
    $region26: #{discriminator_forward.1} parent=5 // pred_check_branch
      %187 = sbr.rel (%p184) target = $region28
    $region27: #{discriminator_forward.1} parent=5 // pred_region
      %s188 = ssub.s32 %s8, 1
      %s189 = smul.u32 %s17, 2
      %s190 = sadd.s32 %s189, %s18
      %p191 = scmp.lt.s32.totalorder %s190, 1
      %s192 = scalar_select %p191, %s190, 1
      %s193 = smul.u32 16, %s192
      %s194 = ssub.s32 20, %s193
      %p195 = scmp.lt.s32.totalorder %s194, 16
      %s196 = scalar_select %p195, %s194, 16
      %s197 = smul.u32 32, %s196
      %p198 = scmp.lt.s32.totalorder %s193, 19
      %s199 = scalar_select %p198, %s193, 19
      %s200 = smul.addr %s199, 2
      %s201 = scalar_lea.vmem %s0, %s200
      %p202 = pneg %p54
      %p203 = pneg %p51
      %s204 = smul.u32 %s17, 2
      %s205 = sadd.s32 %s204, %s18
      %p206 = scmp.lt.s32.totalorder %s205, 1
      %s207 = scalar_select %p206, %s205, 1
      %s208 = smul.u32 16, %s207
      %s209 = ssub.s32 20, %s208
      %p210 = scmp.lt.s32.totalorder %s209, 16
      %s211 = scalar_select %p210, %s209, 16
      %s212 = smul.u32 16, %s211
      %p213 = scmp.lt.s32.totalorder %s208, 19
      %s214 = scalar_select %p213, %s208, 19
      %s215 = scalar_lea.vmem %s1, %s214
      %p216 = pneg %p88
      %p217 = pneg %p85
      %p218 = pneg %p114
      %p219 = pneg %p111
      %p220 = scmp.lt.s32.totalorder %s17, 0
      %s221 = scalar_select %p220, %s17, 0
      %s222 = smul.addr %s221, 8
      %s223 = smul.addr %s222, 2
      %s224 = scalar_lea.vmem %s2, %s223
      %s225 = smul.u32 %s17, 2
      %s226 = sadd.s32 %s225, %s18
      %p227 = scmp.lt.s32.totalorder %s226, 1
      %s228 = scalar_select %p227, %s226, 1
      %s229 = smul.u32 16, %s228
      %s230 = ssub.s32 20, %s229
      %p231 = scmp.lt.s32.totalorder %s230, 16
      %s232 = scalar_select %p231, %s230, 16
      %s233 = smul.u32 32, %s232
      %p234 = scmp.lt.s32.totalorder %s229, 19
      %s235 = scalar_select %p234, %s229, 19
      %s236 = smul.addr %s235, 2
      %s237 = scalar_lea.vmem %s0, %s236
      %s238 = smul.u32 %s17, 2
      %s239 = sadd.s32 %s238, %s18
      %p240 = scmp.lt.s32.totalorder %s239, 1
      %s241 = scalar_select %p240, %s239, 1
      %s242 = smul.u32 16, %s241
      %s243 = ssub.s32 20, %s242
      %p244 = scmp.lt.s32.totalorder %s243, 16
      %s245 = scalar_select %p244, %s243, 16
      %s246 = smul.u32 32, %s245
      %s247 = smul.u32 %s17, 2
      %s248 = sadd.s32 %s247, %s18
      %p249 = scmp.lt.s32.totalorder %s248, 1
      %s250 = scalar_select %p249, %s248, 1
      %s251 = smul.u32 16, %s250
      %s252 = ssub.s32 20, %s251
      %p253 = scmp.lt.s32.totalorder %s252, 16
      %s254 = scalar_select %p253, %s252, 16
      %s255 = smul.u32 16, %s254
      %p256 = scmp.lt.s32.totalorder %s251, 19
      %s257 = scalar_select %p256, %s251, 19
      %s258 = scalar_lea.vmem %s1, %s257
      %s259 = smul.u32 %s17, 2
      %s260 = sadd.s32 %s259, %s18
      %p261 = scmp.lt.s32.totalorder %s260, 1
      %s262 = scalar_select %p261, %s260, 1
      %s263 = smul.u32 16, %s262
      %s264 = ssub.s32 20, %s263
      %p265 = scmp.lt.s32.totalorder %s264, 16
      %s266 = scalar_select %p265, %s264, 16
      %s267 = smul.u32 16, %s266
      %p268 = scmp.lt.s32.totalorder %s17, 0
      %s269 = scalar_select %p268, %s17, 0
      %s270 = smul.addr %s269, 8
      %s271 = smul.addr %s270, 2
      %s272 = scalar_lea.vmem %s2, %s271
      %s273 = smul.u32 %s17, 2
      %s274 = sadd.s32 %s273, %s18
      %p275 = scmp.eq.s32.totalorder %s18, 0
      // Predicated region
      $region29: #{discriminator_forward.1} parent=27 // pred_check
        %p276 = pneg %p275
      $region30: #{discriminator_forward.1} parent=27 // pred_check_branch
        %278 = sbr.rel (%p276) target = $region32
      $region31: #{discriminator_forward.1} parent=27 // pred_region
        %279 = vst [vmem:[%s272] sm:$0xff] 0.0
        %280 = vst [vmem:[%s272 + $0x8] sm:$0xff] 0.0
      $region32: #{discriminator_forward.1} parent=27 // pred_fallthru
        _
      %p281 = scmp.lt.s32.totalorder %s274, 1
      // Predicated region
      $region33: #{discriminator_forward.1} parent=27 // pred_check
        %p282 = pneg %p281
      $region34: #{discriminator_forward.1} parent=27 // pred_check_branch
        %284 = sbr.rel (%p282) target = $region36
      $region35: #{discriminator_forward.1} parent=27 // pred_region
        %v285 = vld [vmem:[%s237] sm:$0xff]
        %v286 = vld [vmem:[%s237 + $0x8] sm:$0xff]
        %v287 = vld [vmem:[%s258] sm:$0xff]
        %v289 = vlaneseq
        %v290 = vshrl.u32 %v289, 7
        %v291 = vsub.s32 0, %v290
        %v292 = vrot.slane %v287, %v291
        %v293 = vlaneseq
        %v294 = vshrl.u32 %v293, 7
        %v295 = vsub.s32 1, %v294
        %v296 = vrot.slane %v287, %v295
        %v297 = vlaneseq
        %v298 = vshrl.u32 %v297, 7
        %v299 = vsub.s32 2, %v298
        %v300 = vrot.slane %v287, %v299
        %v301 = vlaneseq
        %v302 = vshrl.u32 %v301, 7
        %v303 = vsub.s32 3, %v302
        %v304 = vrot.slane %v287, %v303
        %v305 = vlaneseq
        %v306 = vshrl.u32 %v305, 7
        %v307 = vsub.s32 4, %v306
        %v308 = vrot.slane %v287, %v307
        %v309 = vlaneseq
        %v310 = vshrl.u32 %v309, 7
        %v311 = vsub.s32 5, %v310
        %v312 = vrot.slane %v287, %v311
        %v313 = vlaneseq
        %v314 = vshrl.u32 %v313, 7
        %v315 = vsub.s32 6, %v314
        %v316 = vrot.slane %v287, %v315
        %v317 = vlaneseq
        %v318 = vshrl.u32 %v317, 7
        %v319 = vsub.s32 7, %v318
        %v320 = vrot.slane %v287, %v319
        %v321 = vcombine.low %v292, %v296
        %v322 = vcombine.low %v300, %v304
        %v324 = vunpack.c.l.s4 1983009808
        %v325 = vunpack.c.0.s8 %v324
        %v326 = vlaneseq
        %v327 = vshrl.u32 %v326, 7
        %v328 = vsub.s32 %v325, %v327
        %v329 = vrot.slane %v321, %v328
        %v331 = vunpack.c.l.s4 1983009808
        %v332 = vunpack.c.0.s8 %v331
        %v333 = vlaneseq
        %v334 = vshrl.u32 %v333, 7
        %v335 = vsub.s32 %v332, %v334
        %v336 = vrot.slane %v322, %v335
        %v337 = vcombine.low %v329, %v336
        %v338 = vcombine.low %v308, %v312
        %v339 = vcombine.low %v316, %v320
        %v341 = vunpack.c.l.s4 1983009808
        %v342 = vunpack.c.0.s8 %v341
        %v343 = vlaneseq
        %v344 = vshrl.u32 %v343, 7
        %v345 = vsub.s32 %v342, %v344
        %v346 = vrot.slane %v338, %v345
        %v348 = vunpack.c.l.s4 1983009808
        %v349 = vunpack.c.0.s8 %v348
        %v350 = vlaneseq
        %v351 = vshrl.u32 %v350, 7
        %v352 = vsub.s32 %v349, %v351
        %v353 = vrot.slane %v339, %v352
        %v354 = vcombine.low %v346, %v353
        %v357 = vmul.f32 %v285, %v337
        %v358 = vmul.f32 %v286, %v354
        %v359 = vadd.f32 %v357, 0.0
        %v360 = vadd.f32 %v358, 0.0
        %s361 = scalar_lea.vmem %s237, 16
        %v362 = vld [vmem:[%s361] sm:$0xff]
        %v363 = vld [vmem:[%s361 + $0x8] sm:$0xff]
        %s364 = scalar_lea.vmem %s258, 8
        %v365 = vld [vmem:[%s364] sm:$0xff]
        %v367 = vlaneseq
        %v368 = vshrl.u32 %v367, 7
        %v369 = vsub.s32 0, %v368
        %v370 = vrot.slane %v365, %v369
        %v371 = vlaneseq
        %v372 = vshrl.u32 %v371, 7
        %v373 = vsub.s32 1, %v372
        %v374 = vrot.slane %v365, %v373
        %v375 = vlaneseq
        %v376 = vshrl.u32 %v375, 7
        %v377 = vsub.s32 2, %v376
        %v378 = vrot.slane %v365, %v377
        %v379 = vlaneseq
        %v380 = vshrl.u32 %v379, 7
        %v381 = vsub.s32 3, %v380
        %v382 = vrot.slane %v365, %v381
        %v383 = vlaneseq
        %v384 = vshrl.u32 %v383, 7
        %v385 = vsub.s32 4, %v384
        %v386 = vrot.slane %v365, %v385
        %v387 = vlaneseq
        %v388 = vshrl.u32 %v387, 7
        %v389 = vsub.s32 5, %v388
        %v390 = vrot.slane %v365, %v389
        %v391 = vlaneseq
        %v392 = vshrl.u32 %v391, 7
        %v393 = vsub.s32 6, %v392
        %v394 = vrot.slane %v365, %v393
        %v395 = vlaneseq
        %v396 = vshrl.u32 %v395, 7
        %v397 = vsub.s32 7, %v396
        %v398 = vrot.slane %v365, %v397
        %v399 = vcombine.low %v370, %v374
        %v400 = vcombine.low %v378, %v382
        %v402 = vunpack.c.l.s4 1983009808
        %v403 = vunpack.c.0.s8 %v402
        %v404 = vlaneseq
        %v405 = vshrl.u32 %v404, 7
        %v406 = vsub.s32 %v403, %v405
        %v407 = vrot.slane %v399, %v406
        %v409 = vunpack.c.l.s4 1983009808
        %v410 = vunpack.c.0.s8 %v409
        %v411 = vlaneseq
        %v412 = vshrl.u32 %v411, 7
        %v413 = vsub.s32 %v410, %v412
        %v414 = vrot.slane %v400, %v413
        %v415 = vcombine.low %v407, %v414
        %v416 = vcombine.low %v386, %v390
        %v417 = vcombine.low %v394, %v398
        %v419 = vunpack.c.l.s4 1983009808
        %v420 = vunpack.c.0.s8 %v419
        %v421 = vlaneseq
        %v422 = vshrl.u32 %v421, 7
        %v423 = vsub.s32 %v420, %v422
        %v424 = vrot.slane %v416, %v423
        %v426 = vunpack.c.l.s4 1983009808
        %v427 = vunpack.c.0.s8 %v426
        %v428 = vlaneseq
        %v429 = vshrl.u32 %v428, 7
        %v430 = vsub.s32 %v427, %v429
        %v431 = vrot.slane %v417, %v430
        %v432 = vcombine.low %v424, %v431
        %v435 = vmul.f32 %v362, %v415
        %v436 = vmul.f32 %v363, %v432
        %v437 = vadd.f32 %v359, %v435
        %v438 = vadd.f32 %v360, %v436
        %v439 = vld [vmem:[%s272] sm:$0xff]
        %v440 = vld [vmem:[%s272 + $0x8] sm:$0xff]
        %v441 = vadd.f32 %v439, %v437
        %v442 = vadd.f32 %v440, %v438
        %443 = vst [vmem:[%s272] sm:$0xff] %v441
        %444 = vst [vmem:[%s272 + $0x8] sm:$0xff] %v442
      $region36: #{discriminator_forward.1} parent=27 // pred_fallthru
        _
      %p445 = scmp.eq.s32.totalorder %s274, 1
      // Predicated region
      $region37: #{discriminator_forward.1} parent=27 // pred_check
        %p446 = pneg %p445
      $region38: #{discriminator_forward.1} parent=27 // pred_check_branch
        %448 = sbr.rel (%p446) target = $region40
      $region39: #{discriminator_forward.1} parent=27 // pred_region
        %v449 = vlaneseq
        %v450 = vand.u32 %v449, 127
        %v451 = vadd.s32 %v450, 128
        %v452 = vadd.s32 %v450, 256
        %v453 = vadd.s32 %v450, 384
        %v454 = vadd.s32 %v450, 512
        %v455 = vadd.s32 %v450, 640
        %v456 = vadd.s32 %v450, 768
        %v457 = vadd.s32 %v450, 896
        %v458 = vld [vmem:[%s237] sm:$0xff]
        %v459 = vld [vmem:[%s237 + $0x8] sm:$0xff]
        %v460 = vld [vmem:[%s258] sm:$0xff]
        %v462 = vlaneseq
        %v463 = vshrl.u32 %v462, 7
        %v464 = vsub.s32 0, %v463
        %v465 = vrot.slane %v460, %v464
        %v466 = vlaneseq
        %v467 = vshrl.u32 %v466, 7
        %v468 = vsub.s32 1, %v467
        %v469 = vrot.slane %v460, %v468
        %v470 = vlaneseq
        %v471 = vshrl.u32 %v470, 7
        %v472 = vsub.s32 2, %v471
        %v473 = vrot.slane %v460, %v472
        %v474 = vlaneseq
        %v475 = vshrl.u32 %v474, 7
        %v476 = vsub.s32 3, %v475
        %v477 = vrot.slane %v460, %v476
        %v478 = vlaneseq
        %v479 = vshrl.u32 %v478, 7
        %v480 = vsub.s32 4, %v479
        %v481 = vrot.slane %v460, %v480
        %v482 = vlaneseq
        %v483 = vshrl.u32 %v482, 7
        %v484 = vsub.s32 5, %v483
        %v485 = vrot.slane %v460, %v484
        %v486 = vlaneseq
        %v487 = vshrl.u32 %v486, 7
        %v488 = vsub.s32 6, %v487
        %v489 = vrot.slane %v460, %v488
        %v490 = vlaneseq
        %v491 = vshrl.u32 %v490, 7
        %v492 = vsub.s32 7, %v491
        %v493 = vrot.slane %v460, %v492
        %v494 = vcombine.low %v465, %v469
        %v495 = vcombine.low %v473, %v477
        %v497 = vunpack.c.l.s4 1983009808
        %v498 = vunpack.c.0.s8 %v497
        %v499 = vlaneseq
        %v500 = vshrl.u32 %v499, 7
        %v501 = vsub.s32 %v498, %v500
        %v502 = vrot.slane %v494, %v501
        %v504 = vunpack.c.l.s4 1983009808
        %v505 = vunpack.c.0.s8 %v504
        %v506 = vlaneseq
        %v507 = vshrl.u32 %v506, 7
        %v508 = vsub.s32 %v505, %v507
        %v509 = vrot.slane %v495, %v508
        %v510 = vcombine.low %v502, %v509
        %v511 = vcombine.low %v481, %v485
        %v512 = vcombine.low %v489, %v493
        %v514 = vunpack.c.l.s4 1983009808
        %v515 = vunpack.c.0.s8 %v514
        %v516 = vlaneseq
        %v517 = vshrl.u32 %v516, 7
        %v518 = vsub.s32 %v515, %v517
        %v519 = vrot.slane %v511, %v518
        %v521 = vunpack.c.l.s4 1983009808
        %v522 = vunpack.c.0.s8 %v521
        %v523 = vlaneseq
        %v524 = vshrl.u32 %v523, 7
        %v525 = vsub.s32 %v522, %v524
        %v526 = vrot.slane %v512, %v525
        %v527 = vcombine.low %v519, %v526
        %v530 = vmul.f32 %v458, %v510
        %v531 = vmul.f32 %v459, %v527
        %s532 = smul.u32 %s274, 2048
        %s533 = sadd.s32 %s532, 0
        %v534 = vstv %s533
        %v535 = vadd.s32 %v534, %v450
        %v536 = vadd.s32 %v534, %v451
        %v537 = vadd.s32 %v534, %v452
        %v538 = vadd.s32 %v534, %v453
        %v539 = vadd.s32 %v534, %v454
        %v540 = vadd.s32 %v534, %v455
        %v541 = vadd.s32 %v534, %v456
        %v542 = vadd.s32 %v534, %v457
        %vm543 = vcmp.lt.s32.totalorder %v535, 2500
        %vm544 = vcmp.lt.s32.totalorder %v536, 2500
        %vm545 = vcmp.lt.s32.totalorder %v537, 2500
        %vm546 = vcmp.lt.s32.totalorder %v538, 2500
        %vm547 = vcmp.lt.s32.totalorder %v539, 2500
        %vm548 = vcmp.lt.s32.totalorder %v540, 2500
        %vm549 = vcmp.lt.s32.totalorder %v541, 2500
        %vm550 = vcmp.lt.s32.totalorder %v542, 2500
        %v551 = vsel %vm543, 1, 0
        %v552 = vsel %vm544, 1, 0
        %v553 = vsel %vm545, 1, 0
        %v554 = vsel %vm546, 1, 0
        %v555 = vsel %vm547, 1, 0
        %v556 = vsel %vm548, 1, 0
        %v557 = vsel %vm549, 1, 0
        %v558 = vsel %vm550, 1, 0
        %vm559 = vcmp.eq.s32.totalorder %v551, 1
        %vm560 = vcmp.eq.s32.totalorder %v552, 1
        %vm561 = vcmp.eq.s32.totalorder %v553, 1
        %vm562 = vcmp.eq.s32.totalorder %v554, 1
        %vm563 = vcmp.eq.s32.totalorder %v555, 1
        %vm564 = vcmp.eq.s32.totalorder %v556, 1
        %vm565 = vcmp.eq.s32.totalorder %v557, 1
        %vm566 = vcmp.eq.s32.totalorder %v558, 1
        %v569 = vcombine.high %v530, %v530
        %v571 = vunpack.c.l.s4 1983009808
        %v572 = vunpack.c.0.s8 %v571
        %v573 = vlaneseq
        %v574 = vshrl.u32 %v573, 7
        %v575 = vsub.s32 %v572, %v574
        %v576 = vrot.slane %v530, %v575
        %v578 = vunpack.c.l.s4 1983009808
        %v579 = vunpack.c.0.s8 %v578
        %v580 = vlaneseq
        %v581 = vshrl.u32 %v580, 7
        %v582 = vsub.s32 %v579, %v581
        %v583 = vrot.slane %v569, %v582
        %v584 = vcombine.high %v576, %v576
        %v585 = vcombine.high %v583, %v583
        %v586 = vcombine.high %v531, %v531
        %v588 = vunpack.c.l.s4 1983009808
        %v589 = vunpack.c.0.s8 %v588
        %v590 = vlaneseq
        %v591 = vshrl.u32 %v590, 7
        %v592 = vsub.s32 %v589, %v591
        %v593 = vrot.slane %v531, %v592
        %v595 = vunpack.c.l.s4 1983009808
        %v596 = vunpack.c.0.s8 %v595
        %v597 = vlaneseq
        %v598 = vshrl.u32 %v597, 7
        %v599 = vsub.s32 %v596, %v598
        %v600 = vrot.slane %v586, %v599
        %v601 = vcombine.high %v593, %v593
        %v602 = vcombine.high %v600, %v600
        %v611 = vsel %vm559, %v576, 0.0
        %v612 = vsel %vm560, %v584, 0.0
        %v613 = vsel %vm561, %v583, 0.0
        %v614 = vsel %vm562, %v585, 0.0
        %v615 = vsel %vm563, %v593, 0.0
        %v616 = vsel %vm564, %v601, 0.0
        %v617 = vsel %vm565, %v600, 0.0
        %v618 = vsel %vm566, %v602, 0.0
        %v619 = vadd.f32 %v611, 0.0
        %v620 = vadd.f32 %v612, 0.0
        %v621 = vadd.f32 %v613, 0.0
        %v622 = vadd.f32 %v614, 0.0
        %v623 = vadd.f32 %v615, 0.0
        %v624 = vadd.f32 %v616, 0.0
        %v625 = vadd.f32 %v617, 0.0
        %v626 = vadd.f32 %v618, 0.0
        %s627 = scalar_lea.vmem %s237, 16
        %v628 = vld [vmem:[%s627] sm:$0xff]
        %v629 = vld [vmem:[%s627 + $0x8] sm:$0xff]
        %s630 = scalar_lea.vmem %s258, 8
        %v631 = vld [vmem:[%s630] sm:$0xff]
        %v633 = vlaneseq
        %v634 = vshrl.u32 %v633, 7
        %v635 = vsub.s32 0, %v634
        %v636 = vrot.slane %v631, %v635
        %v637 = vlaneseq
        %v638 = vshrl.u32 %v637, 7
        %v639 = vsub.s32 1, %v638
        %v640 = vrot.slane %v631, %v639
        %v641 = vlaneseq
        %v642 = vshrl.u32 %v641, 7
        %v643 = vsub.s32 2, %v642
        %v644 = vrot.slane %v631, %v643
        %v645 = vlaneseq
        %v646 = vshrl.u32 %v645, 7
        %v647 = vsub.s32 3, %v646
        %v648 = vrot.slane %v631, %v647
        %v649 = vlaneseq
        %v650 = vshrl.u32 %v649, 7
        %v651 = vsub.s32 4, %v650
        %v652 = vrot.slane %v631, %v651
        %v653 = vlaneseq
        %v654 = vshrl.u32 %v653, 7
        %v655 = vsub.s32 5, %v654
        %v656 = vrot.slane %v631, %v655
        %v657 = vlaneseq
        %v658 = vshrl.u32 %v657, 7
        %v659 = vsub.s32 6, %v658
        %v660 = vrot.slane %v631, %v659
        %v661 = vlaneseq
        %v662 = vshrl.u32 %v661, 7
        %v663 = vsub.s32 7, %v662
        %v664 = vrot.slane %v631, %v663
        %v665 = vcombine.low %v636, %v640
        %v666 = vcombine.low %v644, %v648
        %v668 = vunpack.c.l.s4 1983009808
        %v669 = vunpack.c.0.s8 %v668
        %v670 = vlaneseq
        %v671 = vshrl.u32 %v670, 7
        %v672 = vsub.s32 %v669, %v671
        %v673 = vrot.slane %v665, %v672
        %v675 = vunpack.c.l.s4 1983009808
        %v676 = vunpack.c.0.s8 %v675
        %v677 = vlaneseq
        %v678 = vshrl.u32 %v677, 7
        %v679 = vsub.s32 %v676, %v678
        %v680 = vrot.slane %v666, %v679
        %v681 = vcombine.low %v673, %v680
        %v682 = vcombine.low %v652, %v656
        %v683 = vcombine.low %v660, %v664
        %v685 = vunpack.c.l.s4 1983009808
        %v686 = vunpack.c.0.s8 %v685
        %v687 = vlaneseq
        %v688 = vshrl.u32 %v687, 7
        %v689 = vsub.s32 %v686, %v688
        %v690 = vrot.slane %v682, %v689
        %v692 = vunpack.c.l.s4 1983009808
        %v693 = vunpack.c.0.s8 %v692
        %v694 = vlaneseq
        %v695 = vshrl.u32 %v694, 7
        %v696 = vsub.s32 %v693, %v695
        %v697 = vrot.slane %v683, %v696
        %v698 = vcombine.low %v690, %v697
        %v701 = vmul.f32 %v628, %v681
        %v702 = vmul.f32 %v629, %v698
        %s703 = sadd.s32 %s532, 1024
        %v704 = vstv %s703
        %v705 = vadd.s32 %v704, %v450
        %v706 = vadd.s32 %v704, %v451
        %v707 = vadd.s32 %v704, %v452
        %v708 = vadd.s32 %v704, %v453
        %v709 = vadd.s32 %v704, %v454
        %v710 = vadd.s32 %v704, %v455
        %v711 = vadd.s32 %v704, %v456
        %v712 = vadd.s32 %v704, %v457
        %vm713 = vcmp.lt.s32.totalorder %v705, 2500
        %vm714 = vcmp.lt.s32.totalorder %v706, 2500
        %vm715 = vcmp.lt.s32.totalorder %v707, 2500
        %vm716 = vcmp.lt.s32.totalorder %v708, 2500
        %vm717 = vcmp.lt.s32.totalorder %v709, 2500
        %vm718 = vcmp.lt.s32.totalorder %v710, 2500
        %vm719 = vcmp.lt.s32.totalorder %v711, 2500
        %vm720 = vcmp.lt.s32.totalorder %v712, 2500
        %v721 = vsel %vm713, 1, 0
        %v722 = vsel %vm714, 1, 0
        %v723 = vsel %vm715, 1, 0
        %v724 = vsel %vm716, 1, 0
        %v725 = vsel %vm717, 1, 0
        %v726 = vsel %vm718, 1, 0
        %v727 = vsel %vm719, 1, 0
        %v728 = vsel %vm720, 1, 0
        %vm729 = vcmp.eq.s32.totalorder %v721, 1
        %vm730 = vcmp.eq.s32.totalorder %v722, 1
        %vm731 = vcmp.eq.s32.totalorder %v723, 1
        %vm732 = vcmp.eq.s32.totalorder %v724, 1
        %vm733 = vcmp.eq.s32.totalorder %v725, 1
        %vm734 = vcmp.eq.s32.totalorder %v726, 1
        %vm735 = vcmp.eq.s32.totalorder %v727, 1
        %vm736 = vcmp.eq.s32.totalorder %v728, 1
        %v739 = vcombine.high %v701, %v701
        %v741 = vunpack.c.l.s4 1983009808
        %v742 = vunpack.c.0.s8 %v741
        %v743 = vlaneseq
        %v744 = vshrl.u32 %v743, 7
        %v745 = vsub.s32 %v742, %v744
        %v746 = vrot.slane %v701, %v745
        %v748 = vunpack.c.l.s4 1983009808
        %v749 = vunpack.c.0.s8 %v748
        %v750 = vlaneseq
        %v751 = vshrl.u32 %v750, 7
        %v752 = vsub.s32 %v749, %v751
        %v753 = vrot.slane %v739, %v752
        %v754 = vcombine.high %v746, %v746
        %v755 = vcombine.high %v753, %v753
        %v756 = vcombine.high %v702, %v702
        %v758 = vunpack.c.l.s4 1983009808
        %v759 = vunpack.c.0.s8 %v758
        %v760 = vlaneseq
        %v761 = vshrl.u32 %v760, 7
        %v762 = vsub.s32 %v759, %v761
        %v763 = vrot.slane %v702, %v762
        %v765 = vunpack.c.l.s4 1983009808
        %v766 = vunpack.c.0.s8 %v765
        %v767 = vlaneseq
        %v768 = vshrl.u32 %v767, 7
        %v769 = vsub.s32 %v766, %v768
        %v770 = vrot.slane %v756, %v769
        %v771 = vcombine.high %v763, %v763
        %v772 = vcombine.high %v770, %v770
        %v781 = vsel %vm729, %v746, 0.0
        %v782 = vsel %vm730, %v754, 0.0
        %v783 = vsel %vm731, %v753, 0.0
        %v784 = vsel %vm732, %v755, 0.0
        %v785 = vsel %vm733, %v763, 0.0
        %v786 = vsel %vm734, %v771, 0.0
        %v787 = vsel %vm735, %v770, 0.0
        %v788 = vsel %vm736, %v772, 0.0
        %v789 = vadd.f32 %v619, %v781
        %v790 = vadd.f32 %v620, %v782
        %v791 = vadd.f32 %v621, %v783
        %v792 = vadd.f32 %v622, %v784
        %v793 = vadd.f32 %v623, %v785
        %v794 = vadd.f32 %v624, %v786
        %v795 = vadd.f32 %v625, %v787
        %v796 = vadd.f32 %v626, %v788
        %v797 = vld [vmem:[%s272] sm:$0xff]
        %v798 = vld [vmem:[%s272 + $0x8] sm:$0xff]
        %v807 = vcombine.low %v789, %v790
        %v808 = vcombine.low %v791, %v792
        %v810 = vunpack.c.l.s4 1983009808
        %v811 = vunpack.c.0.s8 %v810
        %v812 = vlaneseq
        %v813 = vshrl.u32 %v812, 7
        %v814 = vsub.s32 %v811, %v813
        %v815 = vrot.slane %v807, %v814
        %v817 = vunpack.c.l.s4 1983009808
        %v818 = vunpack.c.0.s8 %v817
        %v819 = vlaneseq
        %v820 = vshrl.u32 %v819, 7
        %v821 = vsub.s32 %v818, %v820
        %v822 = vrot.slane %v808, %v821
        %v823 = vcombine.low %v815, %v822
        %v824 = vcombine.low %v793, %v794
        %v825 = vcombine.low %v795, %v796
        %v827 = vunpack.c.l.s4 1983009808
        %v828 = vunpack.c.0.s8 %v827
        %v829 = vlaneseq
        %v830 = vshrl.u32 %v829, 7
        %v831 = vsub.s32 %v828, %v830
        %v832 = vrot.slane %v824, %v831
        %v834 = vunpack.c.l.s4 1983009808
        %v835 = vunpack.c.0.s8 %v834
        %v836 = vlaneseq
        %v837 = vshrl.u32 %v836, 7
        %v838 = vsub.s32 %v835, %v837
        %v839 = vrot.slane %v825, %v838
        %v840 = vcombine.low %v832, %v839
        %v843 = vadd.f32 %v797, %v823
        %v844 = vadd.f32 %v798, %v840
        %845 = vst [vmem:[%s272] sm:$0xff] %v843
        %846 = vst [vmem:[%s272 + $0x8] sm:$0xff] %v844
      $region40: #{discriminator_forward.1} parent=27 // pred_fallthru
        _
      %p847 = scmp.lt.s32.totalorder %s17, 0
      %s848 = scalar_select %p847, %s17, 0
      %s849 = smul.addr %s848, 8
      %s850 = smul.addr %s849, 2
      %s851 = scalar_lea.vmem %s2, %s850
      // Predicated region
      $region41: #{discriminator_forward.1} parent=27 // pred_check
        %p852 = pneg %p111
      $region42: #{discriminator_forward.1} parent=27 // pred_check_branch
        %854 = sbr.rel (%p852) target = $region44
      $region43: #{discriminator_forward.1} parent=27 // pred_region
        _
      $region44: #{discriminator_forward.1} parent=27 // pred_fallthru
        _
      // Predicated region
      $region45: #{discriminator_forward.1} parent=27 // pred_check
        %p855 = pneg %p111
      $region46: #{discriminator_forward.1} parent=27 // pred_check_branch
        %857 = sbr.rel (%p855) target = $region48
      $region47: #{discriminator_forward.1} parent=27 // pred_region
        %p858 = scmp.lt.s32.totalorder %s17, 0
        %s859 = scalar_select %p858, %s17, 0
        %s860 = smul.addr %s859, 8
        %s861 = smul.addr %s860, 2
        %s862 = scalar_lea.vmem %s2, %s861
      $region48: #{discriminator_forward.1} parent=27 // pred_fallthru
        _
    $region28: #{discriminator_forward.1} parent=5 // pred_fallthru
      _
    %p863 = scmp.le.s32.totalorder 2, %s8
    // Predicated region
    $region49: #{discriminator_forward.1} parent=5 // pred_check
      %p864 = pneg %p863
    $region50: #{discriminator_forward.1} parent=5 // pred_check_branch
      %866 = sbr.rel (%p864) target = $region52
    $region51: #{discriminator_forward.1} parent=5 // pred_region
      %s867 = ssub.s32 %s8, 2
    $region52: #{discriminator_forward.1} parent=5 // pred_fallthru
      _
  $region6: #{discriminator_forward.1} parent=0 // loop_footer
    %s12 = sadd.s32 1, %s8
  $region7: #{discriminator_forward.1} parent=0 // loop_footer_branch
    %7 = sbr.rel target = $region3
  $region8: #{discriminator_forward.1} parent=0 // loop_exit
    _

</llo_original>
